<compile_context>
chip_gen: v7x
topology: tpu7x:2x2x1
jax: 0.10.0
libtpu: 0.0.40
codegen_flags: <defaults>
</compile_context>

<pallas_src>
import functools

import jax
import jax.numpy as jnp
from jax.experimental import pallas as pl
from jax.experimental.pallas import tpu as pltpu


def attention_gate_kernel(bn, g_ref, s_ref, wg_ref, ws_ref, b1_ref, wo_ref,
                          bo_ref, o_ref):
    wg = wg_ref[...]          # (Co, Cg)  bf16, BN scale folded in
    ws = ws_ref[...]          # (Co, Cs)  bf16, BN scale folded in
    wo = wo_ref[...]          # (Co, Co)  bf16
    b1 = b1_ref[...]          # (Co, 1)   f32, merged BN shifts
    bo = bo_ref[...]          # (Co, 1)   f32
    # `bn` is a small static batch block; a static Python loop keeps every
    # step a plain (Co, Cin) @ (Cin, tile_p) matmul with no transposes.
    for i in range(bn):
        g = g_ref[i].astype(jnp.bfloat16)   # in-kernel bf16 cast (VPU pack)
        s = s_ref[i].astype(jnp.bfloat16)
        xg = jnp.dot(wg, g, preferred_element_type=jnp.float32)
        xs = jnp.dot(ws, s, preferred_element_type=jnp.float32)
        h = jnp.maximum(xg + xs + b1, 0.0)
        y = jnp.dot(wo, h.astype(jnp.bfloat16),
                    preferred_element_type=jnp.float32) + bo
        # sigmoid(y) = 1 / (1 + exp(-y)); exp and the approximate reciprocal
        # both issue on the EUP slot, leaving the VPU free.  Math stays f32.
        gate = pl.reciprocal(1.0 + jnp.exp(-y), approx=True)
        o_ref[i] = gate.astype(o_ref.dtype)


def _fold_bn(conv_bias, gamma, beta, running_mean, running_var, eps=1e-5):
    scale = gamma / jnp.sqrt(running_var + eps)
    shift = (conv_bias - running_mean) * scale + beta
    return scale, shift


@functools.partial(jax.jit, static_argnames=("max_tile",))
def attention_gate_forward(g, s, params, max_tile=16384):
    N, Cg, H, W = g.shape
    Ns, Cs, Hs, Ws_ = s.shape
    assert (N, H, W) == (Ns, Hs, Ws_)
    Co = params["wg"].shape[1]
    HW = H * W

    # NCHW -> (N, C, H*W): pure reshape.  No pad, no transpose, no dtype cast
    # -- the only HBM traffic is what the kernel itself moves.
    g_mat = g.reshape(N, Cg, HW)
    s_mat = s.reshape(N, Cs, HW)

    # ---- tile sizing -------------------------------------------------------
    # HBM bytes per spatial column per image (f32 reads + bf16 write).
    bytes_per_col = 4 * (Cg + Cs) + 2 * Co
    # Keep the double-buffered working set under v5e's 16 MiB default scoped
    # VMEM (and far below v7x's 64 MiB physical VMEM).
    vmem_budget = 12 * 1024 * 1024
    max_cols = max(128, vmem_budget // (2 * bytes_per_col))

    tile_p = min(HW, max_tile, max_cols)
    if tile_p < HW:
        # A partial last spatial block is fine, but the block itself must be a
        # multiple of 128 lanes when it does not span the full row.
        tile_p = max(128, (tile_p // 128) * 128)

    # When a single image row is small, block several images per grid step so
    # each step moves ~1 MiB of HBM traffic (amortizes ~0.35us/step overhead),
    # while keeping >= 2 grid steps so both v7x TensorCores get work.
    bn = 1
    if tile_p == HW and N > 1:
        per_image = bytes_per_col * tile_p
        bn = max(1, min(N // 2,
                        (1 << 20) // max(per_image, 1),
                        vmem_budget // max(2 * per_image, 1)))

    # ---- fold eval-mode BatchNorm into the 1x1 convs -----------------------
    scale_g, shift_g = _fold_bn(params["bg"], params["gamma_g"], params["beta_g"],
                                params["mean_g"], params["var_g"])
    scale_s, shift_s = _fold_bn(params["bs"], params["gamma_s"], params["beta_s"],
                                params["mean_s"], params["var_s"])

    wg_f = (params["wg"] * scale_g[None, :]).T.astype(jnp.bfloat16)   # (Co, Cg)
    ws_f = (params["ws"] * scale_s[None, :]).T.astype(jnp.bfloat16)   # (Co, Cs)
    b1 = (shift_g + shift_s).reshape(Co, 1).astype(jnp.float32)
    wo_f = params["wo"].T.astype(jnp.bfloat16)                        # (Co, Co)
    bo = params["bo"].reshape(Co, 1).astype(jnp.float32)

    grid = (pl.cdiv(N, bn), pl.cdiv(HW, tile_p))

    act_spec = lambda c: pl.BlockSpec((bn, c, tile_p), lambda n, p: (n, 0, p))
    w_spec = lambda shp: pl.BlockSpec(shp, lambda n, p: (0, 0))

    out = pl.pallas_call(
        functools.partial(attention_gate_kernel, bn),
        out_shape=jax.ShapeDtypeStruct((N, Co, HW), jnp.bfloat16),
        grid_spec=pltpu.PrefetchScalarGridSpec(
            num_scalar_prefetch=0,
            grid=grid,
            in_specs=[
                act_spec(Cg),          # g tile  (bn, Cg, tile_p), f32
                act_spec(Cs),          # s tile  (bn, Cs, tile_p), f32
                w_spec((Co, Cg)),      # folded Wg (bf16)
                w_spec((Co, Cs)),      # folded Ws (bf16)
                w_spec((Co, 1)),       # merged BN shift (f32)
                w_spec((Co, Co)),      # output conv weight (bf16)
                w_spec((Co, 1)),       # output conv bias (f32)
            ],
            out_specs=act_spec(Co),    # (bn, Co, tile_p), bf16, lane-dense
        ),
        compiler_params=pltpu.CompilerParams(
            dimension_semantics=("parallel", "parallel")),
    )(g_mat, s_mat, wg_f, ws_f, b1, wo_f, bo)

    # Restore NCHW view -- pure reshape, no extra HBM pass.
    return out.reshape(N, Co, H, W)


def make_params(key, in_c, out_c):
    """Deterministic synthetic parameters matching the PyTorch module shapes."""
    ks = jax.random.split(key, 14)
    cg, cs = in_c
    co = out_c
    f32 = jnp.float32
    params = {
        # Wg: Conv2d(cg, co, 1) + BatchNorm2d(co)
        "wg": jax.random.normal(ks[0], (cg, co), f32) * 0.2,
        "bg": jax.random.normal(ks[1], (co,), f32) * 0.1,
        "gamma_g": 1.0 + 0.1 * jax.random.normal(ks[2], (co,), f32),
        "beta_g": 0.05 * jax.random.normal(ks[3], (co,), f32),
        "mean_g": 0.1 * jax.random.normal(ks[4], (co,), f32),
        "var_g": 0.5 + jax.random.uniform(ks[5], (co,), f32),
        # Ws: Conv2d(cs, co, 1) + BatchNorm2d(co)
        "ws": jax.random.normal(ks[6], (cs, co), f32) * 0.2,
        "bs": jax.random.normal(ks[7], (co,), f32) * 0.1,
        "gamma_s": 1.0 + 0.1 * jax.random.normal(ks[8], (co,), f32),
        "beta_s": 0.05 * jax.random.normal(ks[9], (co,), f32),
        "mean_s": 0.1 * jax.random.normal(ks[12], (co,), f32),
        "var_s": 0.5 + jax.random.uniform(ks[13], (co,), f32),
        # output: Conv2d(co, co, 1) + Sigmoid
        "wo": jax.random.normal(ks[10], (co, co), f32) * 0.2,
        "bo": jax.random.normal(ks[11], (co,), f32) * 0.1,
    }
    return params


def reference_forward(g, s, params):
    """Pure-JAX f32 reference mirroring the PyTorch forward (eval-mode BN)."""
    def conv1x1(x, w, b):  # x: NCHW, w: (Cin, Cout)
        return jnp.einsum("nchw,cd->ndhw", x, w) + b[None, :, None, None]

    def bn(x, gamma, beta, mean, var, eps=1e-5):
        scale = gamma / jnp.sqrt(var + eps)
        return (x - mean[None, :, None, None]) * scale[None, :, None, None] \
            + beta[None, :, None, None]

    xg = bn(conv1x1(g, params["wg"], params["bg"]),
            params["gamma_g"], params["beta_g"], params["mean_g"], params["var_g"])
    xs = bn(conv1x1(s, params["ws"], params["bs"]),
            params["gamma_s"], params["beta_s"], params["mean_s"], params["var_s"])
    h = jnp.maximum(xg + xs, 0.0)
    y = conv1x1(h, params["wo"], params["bo"])
    return jax.nn.sigmoid(y)


if __name__ == "__main__":
    # TODO(synk): BatchNorm is implemented in eval mode (running stats);
    # PyTorch training-mode batch statistics are not reproduced.
    key = jax.random.PRNGKey(0)
    k_g, k_s, k_p = jax.random.split(key, 3)

    in_c = (4, 6)   # (channels of g, channels of s)
    out_c = 8
    N, H, W = 2, 16, 16

    g = jax.random.normal(k_g, (N, in_c[0], H, W), jnp.float32)
    s = jax.random.normal(k_s, (N, in_c[1], H, W), jnp.float32)
    params = make_params(k_p, in_c, out_c)

    out = attention_gate_forward(g, s, params)
    out = jax.block_until_ready(out)

    ref = reference_forward(g, s, params)
    assert out.shape == (N, out_c, H, W)
    # bf16 weights / in-kernel bf16 activations / bf16 output vs f32 reference.
    max_err = jnp.max(jnp.abs(out.astype(jnp.float32) - ref))
    assert max_err < 3e-2, f"max abs error {max_err}"

    print("KERNEL_OK")
</pallas_src>

<mosaic_0001>
module attributes {stable_mosaic.version = 11 : i64} {
  func.func @attention_gate_kernel(%arg0: i32, %arg1: i32, %arg2: memref<1x4x256xf32, #tpu.memory_space<vmem>>, %arg3: memref<1x6x256xf32, #tpu.memory_space<vmem>>, %arg4: memref<8x4xbf16, #tpu.memory_space<vmem>>, %arg5: memref<8x6xbf16, #tpu.memory_space<vmem>>, %arg6: memref<8x1xf32, #tpu.memory_space<vmem>>, %arg7: memref<8x8xbf16, #tpu.memory_space<vmem>>, %arg8: memref<8x1xf32, #tpu.memory_space<vmem>>, %arg9: memref<1x8x256xbf16, #tpu.memory_space<vmem>>) attributes {dimension_semantics = [#tpu.dimension_semantics<parallel>, #tpu.dimension_semantics<parallel>], iteration_bounds = array<i64: 2, 1>, scalar_prefetch = 0 : i64, scratch_operands = 0 : i64, tpu.core_type = #tpu.core_type<tc>, window_params = [{transform_indices = @transform_0, window_bounds = array<i64: 1, 4, 256>}, {transform_indices = @transform_1, window_bounds = array<i64: 1, 6, 256>}, {pipeline_mode = #tpu.pipeline_mode<synchronous>, transform_indices = @transform_2, window_bounds = array<i64: 8, 4>}, {pipeline_mode = #tpu.pipeline_mode<synchronous>, transform_indices = @transform_3, window_bounds = array<i64: 8, 6>}, {pipeline_mode = #tpu.pipeline_mode<synchronous>, transform_indices = @transform_4, window_bounds = array<i64: 8, 1>}, {pipeline_mode = #tpu.pipeline_mode<synchronous>, transform_indices = @transform_5, window_bounds = array<i64: 8, 8>}, {pipeline_mode = #tpu.pipeline_mode<synchronous>, transform_indices = @transform_6, window_bounds = array<i64: 8, 1>}, {transform_indices = @transform_7, window_bounds = array<i64: 1, 8, 256>}]} {
    %c0 = arith.constant 0 : index
    %c0_0 = arith.constant 0 : index
    %0 = vector.load %arg4[%c0, %c0_0] : memref<8x4xbf16, #tpu.memory_space<vmem>>, vector<8x4xbf16>
    %c0_1 = arith.constant 0 : index
    %c0_2 = arith.constant 0 : index
    %1 = vector.load %arg5[%c0_1, %c0_2] : memref<8x6xbf16, #tpu.memory_space<vmem>>, vector<8x6xbf16>
    %c0_3 = arith.constant 0 : index
    %c0_4 = arith.constant 0 : index
    %2 = vector.load %arg7[%c0_3, %c0_4] : memref<8x8xbf16, #tpu.memory_space<vmem>>, vector<8x8xbf16>
    %c0_5 = arith.constant 0 : index
    %c0_6 = arith.constant 0 : index
    %3 = vector.load %arg6[%c0_5, %c0_6] : memref<8x1xf32, #tpu.memory_space<vmem>>, vector<8x1xf32>
    %c0_7 = arith.constant 0 : index
    %c0_8 = arith.constant 0 : index
    %4 = vector.load %arg8[%c0_7, %c0_8] : memref<8x1xf32, #tpu.memory_space<vmem>>, vector<8x1xf32>
    %c0_9 = arith.constant 0 : index
    %c0_10 = arith.constant 0 : index
    %c0_11 = arith.constant 0 : index
    %5 = vector.load %arg2[%c0_9, %c0_10, %c0_11] : memref<1x4x256xf32, #tpu.memory_space<vmem>>, vector<1x4x256xf32>
    %6 = vector.shape_cast %5 : vector<1x4x256xf32> to vector<4x256xf32>
    %7 = arith.truncf %6 : vector<4x256xf32> to vector<4x256xbf16>
    %c0_12 = arith.constant 0 : index
    %c0_13 = arith.constant 0 : index
    %c0_14 = arith.constant 0 : index
    %8 = vector.load %arg3[%c0_12, %c0_13, %c0_14] : memref<1x6x256xf32, #tpu.memory_space<vmem>>, vector<1x6x256xf32>
    %9 = vector.shape_cast %8 : vector<1x6x256xf32> to vector<6x256xf32>
    %10 = arith.truncf %9 : vector<6x256xf32> to vector<6x256xbf16>
    %cst = arith.constant dense<0.000000e+00> : vector<8x256xf32>
    %11 = tpu.matmul %0, %7, %cst {dimension_numbers = #tpu.dot_dimension_numbers<[1], [0], [0], [1], [0, 0, 1, 1], [], []>} : vector<8x4xbf16>, vector<4x256xbf16>, vector<8x256xf32> -> vector<8x256xf32>
    %cst_15 = arith.constant dense<0.000000e+00> : vector<8x256xf32>
    %12 = tpu.matmul %1, %10, %cst_15 {dimension_numbers = #tpu.dot_dimension_numbers<[1], [0], [0], [1], [0, 0, 1, 1], [], []>} : vector<8x6xbf16>, vector<6x256xbf16>, vector<8x256xf32> -> vector<8x256xf32>
    %13 = arith.addf %11, %12 : vector<8x256xf32>
    %14 = vector.broadcast %3 : vector<8x1xf32> to vector<8x256xf32>
    %15 = arith.addf %13, %14 : vector<8x256xf32>
    %cst_16 = arith.constant 0.000000e+00 : f32
    %16 = vector.broadcast %cst_16 : f32 to vector<8x256xf32>
    %17 = arith.maximumf %15, %16 : vector<8x256xf32>
    %18 = arith.truncf %17 : vector<8x256xf32> to vector<8x256xbf16>
    %cst_17 = arith.constant dense<0.000000e+00> : vector<8x256xf32>
    %19 = tpu.matmul %2, %18, %cst_17 {dimension_numbers = #tpu.dot_dimension_numbers<[1], [0], [0], [1], [0, 0, 1, 1], [], []>} : vector<8x8xbf16>, vector<8x256xbf16>, vector<8x256xf32> -> vector<8x256xf32>
    %20 = vector.broadcast %4 : vector<8x1xf32> to vector<8x256xf32>
    %21 = arith.addf %19, %20 : vector<8x256xf32>
    %cst_18 = arith.constant 0.000000e+00 : f32
    %22 = vector.broadcast %cst_18 : f32 to vector<8x256xf32>
    %23 = arith.subf %22, %21 : vector<8x256xf32>
    %24 = math.exp %23 : vector<8x256xf32>
    %cst_19 = arith.constant 1.000000e+00 : f32
    %25 = vector.broadcast %cst_19 : f32 to vector<8x256xf32>
    %26 = arith.addf %25, %24 : vector<8x256xf32>
    %27 = tpu.reciprocal %26 {approx = true} : vector<8x256xf32> -> vector<8x256xf32>
    %28 = arith.truncf %27 : vector<8x256xf32> to vector<8x256xbf16>
    %c0_20 = arith.constant 0 : index
    %c0_21 = arith.constant 0 : index
    %c0_22 = arith.constant 0 : index
    %29 = vector.load %arg9[%c0_20, %c0_21, %c0_22] : memref<1x8x256xbf16, #tpu.memory_space<vmem>>, vector<1x8x256xbf16>
    %30 = vector.shape_cast %29 : vector<1x8x256xbf16> to vector<8x256xbf16>
    %31 = vector.shape_cast %28 : vector<8x256xbf16> to vector<1x8x256xbf16>
    tpu.vector_store %arg9[%c0_20, %c0_21, %c0_22], %31 {strides = array<i32>} : memref<1x8x256xbf16, #tpu.memory_space<vmem>>, vector<1x8x256xbf16>,
    return
  }
  func.func @transform_0(%arg0: i32, %arg1: i32) -> (i32, i32, i32) {
    %c0_i32 = arith.constant 0 : i32
    %c0_i32_0 = arith.constant 0 : i32
    return %arg0, %c0_i32, %arg1 : i32, i32, i32
  }
  func.func @transform_1(%arg0: i32, %arg1: i32) -> (i32, i32, i32) {
    %c0_i32 = arith.constant 0 : i32
    %c0_i32_0 = arith.constant 0 : i32
    return %arg0, %c0_i32, %arg1 : i32, i32, i32
  }
  func.func @transform_2(%arg0: i32, %arg1: i32) -> (i32, i32) {
    %c0_i32 = arith.constant 0 : i32
    %c0_i32_0 = arith.constant 0 : i32
    %c0_i32_1 = arith.constant 0 : i32
    return %c0_i32, %c0_i32_0 : i32, i32
  }
  func.func @transform_3(%arg0: i32, %arg1: i32) -> (i32, i32) {
    %c0_i32 = arith.constant 0 : i32
    %c0_i32_0 = arith.constant 0 : i32
    %c0_i32_1 = arith.constant 0 : i32
    return %c0_i32, %c0_i32_0 : i32, i32
  }
  func.func @transform_4(%arg0: i32, %arg1: i32) -> (i32, i32) {
    %c0_i32 = arith.constant 0 : i32
    %c0_i32_0 = arith.constant 0 : i32
    %c0_i32_1 = arith.constant 0 : i32
    return %c0_i32, %c0_i32_0 : i32, i32
  }
  func.func @transform_5(%arg0: i32, %arg1: i32) -> (i32, i32) {
    %c0_i32 = arith.constant 0 : i32
    %c0_i32_0 = arith.constant 0 : i32
    %c0_i32_1 = arith.constant 0 : i32
    return %c0_i32, %c0_i32_0 : i32, i32
  }
  func.func @transform_6(%arg0: i32, %arg1: i32) -> (i32, i32) {
    %c0_i32 = arith.constant 0 : i32
    %c0_i32_0 = arith.constant 0 : i32
    %c0_i32_1 = arith.constant 0 : i32
    return %c0_i32, %c0_i32_0 : i32, i32
  }
  func.func @transform_7(%arg0: i32, %arg1: i32) -> (i32, i32, i32) {
    %c0_i32 = arith.constant 0 : i32
    %c0_i32_0 = arith.constant 0 : i32
    return %arg0, %c0_i32, %arg1 : i32, i32, i32
  }
}

</mosaic_0001>

<llo_original>
// kernel: attention_gate_forward.1
$region0: #{attention_gate_forward.1}
  #allocation0 [shape = 'u32[]', space=smem, size = 0x4, offset = 0x4, fixed_abs, tag = 'smem constant byte address 0x4 - core index']
  #allocation1 [shape = 'u32[144,128]{1,0:T(1,128)}', space=vmem, size = 0x12000, scoped, tag = 'internal scratch']
  %s0 = inlined_call_operand.vmem [shape: f32[2,4,256], index: 0, kind: input, shape index: {}]
  %s1 = inlined_call_operand.vmem [shape: f32[2,6,256], index: 1, kind: input, shape index: {}]
  %s2 = inlined_call_operand.vmem [shape: bf16[8,4], index: 2, kind: input, shape index: {}]
  %s3 = inlined_call_operand.vmem [shape: bf16[8,6], index: 3, kind: input, shape index: {}]
  %s4 = inlined_call_operand.vmem [shape: f32[8,1], index: 4, kind: input, shape index: {}]
  %s5 = inlined_call_operand.vmem [shape: bf16[8,8], index: 5, kind: input, shape index: {}]
  %s6 = inlined_call_operand.vmem [shape: f32[8,1], index: 6, kind: input, shape index: {}]
  %s7 = inlined_call_operand.vmem [shape: bf16[2,8,256], index: 7, kind: output, shape index: {}]
  %s8 = sld [smem:[#allocation0]]
  $region61: #{attention_gate_forward.1} parent=0
    _
  %s10 = ssub.s32 1, %s8
  %s11 = scalar_select 0, %s10, %s8
  loop: start=0, step=1, limit=4
  $region2: #{attention_gate_forward.1} parent=0 // loop_pre_header
    _
  $region3: #{attention_gate_forward.1} parent=0 // loop_header
    %s13 = sphi 0, %s17
    %p14 = scmp.ge.s32.totalorder %s13, 4
    %s20 = sphi 0, %s32
    %s21 = sphi 0, %s28
    %s22 = sphi 0, %s20
    %s23 = sphi 0, %s21
    %s24 = sphi 0, %s22
    %s25 = sphi 0, %s23
    %s37 = sphi 0, %s39
    %s40 = sphi 0, %s37
    %s41 = sphi 0, %s40
    %s57 = sphi 0, %s41
    %s65 = sphi 0, %s67
    %s68 = sphi 0, %s65
    %s69 = sphi 0, %s68
    %s85 = sphi 0, %s69
    %s89 = sphi 0, %s89
    %s91 = sphi 0, %s89
    %s92 = sphi 0, %s91
    %s106 = sphi 0, %s92
    %s110 = sphi 0, %s110
    %s112 = sphi 0, %s110
    %s113 = sphi 0, %s112
    %s127 = sphi 0, %s113
    %s131 = sphi 0, %s131
    %s133 = sphi 0, %s131
    %s134 = sphi 0, %s133
    %s148 = sphi 0, %s134
    %s152 = sphi 0, %s152
    %s154 = sphi 0, %s152
    %s155 = sphi 0, %s154
    %s169 = sphi 0, %s155
    %s173 = sphi 0, %s173
    %s175 = sphi 0, %s173
    %s176 = sphi 0, %s175
    %s190 = sphi 0, %s176
    %s198 = sphi 0, %s200
    %s201 = sphi 0, %s198
    %s202 = sphi 0, %s201
    %s218 = sphi 0, %s202
  $region4: #{attention_gate_forward.1} parent=0 // loop_header_branch
    %16 = sbr.rel (%p14) target = $region8
  $region5: #{attention_gate_forward.1} parent=0 // loop_body
    %s18 = ssub.s32 %s13, 1
    %s19 = ssub.s32 %s13, 2
    %s26 = sadd.s32 1, %s21
    %p27 = scmp.ge.s32.totalorder %s26, 1
    %s28 = scalar_select %p27, 0, %s26
    %s29 = sadd.s32 1, %s20
    %s30 = scalar_select %p27, %s29, %s20
    %p31 = scmp.ge.s32.totalorder %s30, 2
    %s32 = scalar_select %p31, 0, %s30
    %s33 = ssub.s32 %s20, %s32
    %s34 = ssub.s32 %s21, %s28
    %s35 = sor.u32 %s33, %s34
    %p36 = scmp.eq.s32.totalorder %s35, 0
    %s38 = sadd.s32 %s37, 1
    %s39 = scalar_select %p36, %s37, %s38
    %p42 = pneg %p36
    %p43 = scmp.eq.s32.totalorder %s13, 1
    %p44 = por %p42, %p43
    %p45 = scmp.ne.s32.totalorder %s37, %s40
    %p46 = scmp.eq.s32.totalorder %s13, 0
    %p47 = por %p45, %p46
    %p48 = scmp.ne.s32.totalorder %s37, %s40
    %p49 = scmp.eq.s32.totalorder %s18, 1
    %p50 = por %p48, %p49
    %p51 = scmp.ne.s32.totalorder %s40, %s41
    %p52 = scmp.eq.s32.totalorder %s18, 0
    %p53 = por %p51, %p52
    %p54 = scmp.ne.s32.totalorder %s40, %s41
    %p55 = scmp.eq.s32.totalorder %s19, 1
    %p56 = por %p54, %p55
    %p58 = scmp.ne.s32.totalorder %s41, %s57
    %p59 = scmp.eq.s32.totalorder %s19, 0
    %p60 = por %p58, %p59
    %s61 = ssub.s32 %s20, %s32
    %s62 = ssub.s32 %s21, %s28
    %s63 = sor.u32 %s61, %s62
    %p64 = scmp.eq.s32.totalorder %s63, 0
    %s66 = sadd.s32 %s65, 1
    %s67 = scalar_select %p64, %s65, %s66
    %p70 = pneg %p64
    %p71 = scmp.eq.s32.totalorder %s13, 1
    %p72 = por %p70, %p71
    %p73 = scmp.ne.s32.totalorder %s65, %s68
    %p74 = scmp.eq.s32.totalorder %s13, 0
    %p75 = por %p73, %p74
    %p76 = scmp.ne.s32.totalorder %s65, %s68
    %p77 = scmp.eq.s32.totalorder %s18, 1
    %p78 = por %p76, %p77
    %p79 = scmp.ne.s32.totalorder %s68, %s69
    %p80 = scmp.eq.s32.totalorder %s18, 0
    %p81 = por %p79, %p80
    %p82 = scmp.ne.s32.totalorder %s68, %s69
    %p83 = scmp.eq.s32.totalorder %s19, 1
    %p84 = por %p82, %p83
    %p86 = scmp.ne.s32.totalorder %s69, %s85
    %p87 = scmp.eq.s32.totalorder %s19, 0
    %p88 = por %p86, %p87
    %s90 = sadd.s32 %s89, 1
    %p93 = scmp.eq.s32.totalorder %s13, 1
    %p94 = scmp.ne.s32.totalorder %s89, %s91
    %p95 = scmp.eq.s32.totalorder %s13, 0
    %p96 = por %p94, %p95
    %p97 = scmp.ne.s32.totalorder %s89, %s91
    %p98 = scmp.eq.s32.totalorder %s18, 1
    %p99 = por %p97, %p98
    %p100 = scmp.ne.s32.totalorder %s91, %s92
    %p101 = scmp.eq.s32.totalorder %s18, 0
    %p102 = por %p100, %p101
    %p103 = scmp.ne.s32.totalorder %s91, %s92
    %p104 = scmp.eq.s32.totalorder %s19, 1
    %p105 = por %p103, %p104
    %p107 = scmp.ne.s32.totalorder %s92, %s106
    %p108 = scmp.eq.s32.totalorder %s19, 0
    %p109 = por %p107, %p108
    %s111 = sadd.s32 %s110, 1
    %p114 = scmp.eq.s32.totalorder %s13, 1
    %p115 = scmp.ne.s32.totalorder %s110, %s112
    %p116 = scmp.eq.s32.totalorder %s13, 0
    %p117 = por %p115, %p116
    %p118 = scmp.ne.s32.totalorder %s110, %s112
    %p119 = scmp.eq.s32.totalorder %s18, 1
    %p120 = por %p118, %p119
    %p121 = scmp.ne.s32.totalorder %s112, %s113
    %p122 = scmp.eq.s32.totalorder %s18, 0
    %p123 = por %p121, %p122
    %p124 = scmp.ne.s32.totalorder %s112, %s113
    %p125 = scmp.eq.s32.totalorder %s19, 1
    %p126 = por %p124, %p125
    %p128 = scmp.ne.s32.totalorder %s113, %s127
    %p129 = scmp.eq.s32.totalorder %s19, 0
    %p130 = por %p128, %p129
    %s132 = sadd.s32 %s131, 1
    %p135 = scmp.eq.s32.totalorder %s13, 1
    %p136 = scmp.ne.s32.totalorder %s131, %s133
    %p137 = scmp.eq.s32.totalorder %s13, 0
    %p138 = por %p136, %p137
    %p139 = scmp.ne.s32.totalorder %s131, %s133
    %p140 = scmp.eq.s32.totalorder %s18, 1
    %p141 = por %p139, %p140
    %p142 = scmp.ne.s32.totalorder %s133, %s134
    %p143 = scmp.eq.s32.totalorder %s18, 0
    %p144 = por %p142, %p143
    %p145 = scmp.ne.s32.totalorder %s133, %s134
    %p146 = scmp.eq.s32.totalorder %s19, 1
    %p147 = por %p145, %p146
    %p149 = scmp.ne.s32.totalorder %s134, %s148
    %p150 = scmp.eq.s32.totalorder %s19, 0
    %p151 = por %p149, %p150
    %s153 = sadd.s32 %s152, 1
    %p156 = scmp.eq.s32.totalorder %s13, 1
    %p157 = scmp.ne.s32.totalorder %s152, %s154
    %p158 = scmp.eq.s32.totalorder %s13, 0
    %p159 = por %p157, %p158
    %p160 = scmp.ne.s32.totalorder %s152, %s154
    %p161 = scmp.eq.s32.totalorder %s18, 1
    %p162 = por %p160, %p161
    %p163 = scmp.ne.s32.totalorder %s154, %s155
    %p164 = scmp.eq.s32.totalorder %s18, 0
    %p165 = por %p163, %p164
    %p166 = scmp.ne.s32.totalorder %s154, %s155
    %p167 = scmp.eq.s32.totalorder %s19, 1
    %p168 = por %p166, %p167
    %p170 = scmp.ne.s32.totalorder %s155, %s169
    %p171 = scmp.eq.s32.totalorder %s19, 0
    %p172 = por %p170, %p171
    %s174 = sadd.s32 %s173, 1
    %p177 = scmp.eq.s32.totalorder %s13, 1
    %p178 = scmp.ne.s32.totalorder %s173, %s175
    %p179 = scmp.eq.s32.totalorder %s13, 0
    %p180 = por %p178, %p179
    %p181 = scmp.ne.s32.totalorder %s173, %s175
    %p182 = scmp.eq.s32.totalorder %s18, 1
    %p183 = por %p181, %p182
    %p184 = scmp.ne.s32.totalorder %s175, %s176
    %p185 = scmp.eq.s32.totalorder %s18, 0
    %p186 = por %p184, %p185
    %p187 = scmp.ne.s32.totalorder %s175, %s176
    %p188 = scmp.eq.s32.totalorder %s19, 1
    %p189 = por %p187, %p188
    %p191 = scmp.ne.s32.totalorder %s176, %s190
    %p192 = scmp.eq.s32.totalorder %s19, 0
    %p193 = por %p191, %p192
    %s194 = ssub.s32 %s20, %s32
    %s195 = ssub.s32 %s21, %s28
    %s196 = sor.u32 %s194, %s195
    %p197 = scmp.eq.s32.totalorder %s196, 0
    %s199 = sadd.s32 %s198, 1
    %s200 = scalar_select %p197, %s198, %s199
    %p203 = pneg %p197
    %p204 = scmp.eq.s32.totalorder %s13, 1
    %p205 = por %p203, %p204
    %p206 = scmp.ne.s32.totalorder %s198, %s201
    %p207 = scmp.eq.s32.totalorder %s13, 0
    %p208 = por %p206, %p207
    %p209 = scmp.ne.s32.totalorder %s198, %s201
    %p210 = scmp.eq.s32.totalorder %s18, 1
    %p211 = por %p209, %p210
    %p212 = scmp.ne.s32.totalorder %s201, %s202
    %p213 = scmp.eq.s32.totalorder %s18, 0
    %p214 = por %p212, %p213
    %p215 = scmp.ne.s32.totalorder %s201, %s202
    %p216 = scmp.eq.s32.totalorder %s19, 1
    %p217 = por %p215, %p216
    %p219 = scmp.ne.s32.totalorder %s202, %s218
    %p220 = scmp.eq.s32.totalorder %s19, 0
    %p221 = por %p219, %p220
    %p222 = scmp.le.s32.totalorder 1, %s13
    %p223 = scmp.lt.s32.totalorder %s13, 3
    %p224 = pnand %p222, %p223
    %p225 = pneg %p224
    // Predicated region
    $region9: #{attention_gate_forward.1} parent=5 // pred_check
      _
    $region10: #{attention_gate_forward.1} parent=5 // pred_check_branch
      %227 = sbr.rel (%p224) target = $region12
    $region11: #{attention_gate_forward.1} parent=5 // pred_region
      %s228 = ssub.s32 %s13, 1
      // Predicated region
      $region13: #{attention_gate_forward.1} parent=11 // pred_check
        %p229 = pneg %p102
      $region14: #{attention_gate_forward.1} parent=11 // pred_check_branch
        %231 = sbr.rel (%p229) target = $region16
      $region15: #{attention_gate_forward.1} parent=11 // pred_region
        _
      $region16: #{attention_gate_forward.1} parent=11 // pred_fallthru
        _
      // Predicated region
      $region17: #{attention_gate_forward.1} parent=11 // pred_check
        %p232 = pneg %p123
      $region18: #{attention_gate_forward.1} parent=11 // pred_check_branch
        %234 = sbr.rel (%p232) target = $region20
      $region19: #{attention_gate_forward.1} parent=11 // pred_region
        _
      $region20: #{attention_gate_forward.1} parent=11 // pred_fallthru
        _
      // Predicated region
      $region21: #{attention_gate_forward.1} parent=11 // pred_check
        %p235 = pneg %p144
      $region22: #{attention_gate_forward.1} parent=11 // pred_check_branch
        %237 = sbr.rel (%p235) target = $region24
      $region23: #{attention_gate_forward.1} parent=11 // pred_region
        _
      $region24: #{attention_gate_forward.1} parent=11 // pred_fallthru
        _
      // Predicated region
      $region25: #{attention_gate_forward.1} parent=11 // pred_check
        %p238 = pneg %p165
      $region26: #{attention_gate_forward.1} parent=11 // pred_check_branch
        %240 = sbr.rel (%p238) target = $region28
      $region27: #{attention_gate_forward.1} parent=11 // pred_region
        _
      $region28: #{attention_gate_forward.1} parent=11 // pred_fallthru
        _
      // Predicated region
      $region29: #{attention_gate_forward.1} parent=11 // pred_check
        %p241 = pneg %p186
      $region30: #{attention_gate_forward.1} parent=11 // pred_check_branch
        %243 = sbr.rel (%p241) target = $region32
      $region31: #{attention_gate_forward.1} parent=11 // pred_region
        _
      $region32: #{attention_gate_forward.1} parent=11 // pred_fallthru
        _
    $region12: #{attention_gate_forward.1} parent=5 // pred_fallthru
      _
    %p244 = scmp.lt.s32.totalorder %s13, 2
    // Predicated region
    $region33: #{attention_gate_forward.1} parent=5 // pred_check
      %p245 = pneg %p244
    $region34: #{attention_gate_forward.1} parent=5 // pred_check_branch
      %247 = sbr.rel (%p245) target = $region36
    $region35: #{attention_gate_forward.1} parent=5 // pred_region
      // Predicated region
      $region37: #{attention_gate_forward.1} parent=35 // pred_check
        %p248 = pneg %p47
      $region38: #{attention_gate_forward.1} parent=35 // pred_check_branch
        %250 = sbr.rel (%p248) target = $region40
      $region39: #{attention_gate_forward.1} parent=35 // pred_region
        %s251 = smul.u32 2, %s21
        %p252 = scmp.lt.s32.totalorder %s20, 1
        %s253 = scalar_select %p252, %s20, 1
        %p254 = scmp.lt.s32.totalorder %s251, 1
        %s255 = scalar_select %p254, %s251, 1
        %s256 = smul.addr %s253, 2
        %s257 = sadd.s32 %s255, %s256
        %s258 = smul.addr %s257, 4
        %s259 = scalar_lea.vmem %s0, %s258
        %s260 = smul.u32 2, %s21
      $region40: #{attention_gate_forward.1} parent=35 // pred_fallthru
        _
      // Predicated region
      $region41: #{attention_gate_forward.1} parent=35 // pred_check
        %p261 = pneg %p75
      $region42: #{attention_gate_forward.1} parent=35 // pred_check_branch
        %263 = sbr.rel (%p261) target = $region44
      $region43: #{attention_gate_forward.1} parent=35 // pred_region
        %s264 = smul.u32 2, %s21
        %p265 = scmp.lt.s32.totalorder %s20, 1
        %s266 = scalar_select %p265, %s20, 1
        %p267 = scmp.lt.s32.totalorder %s264, 1
        %s268 = scalar_select %p267, %s264, 1
        %s269 = smul.addr %s266, 2
        %s270 = sadd.s32 %s268, %s269
        %s271 = smul.addr %s270, 8
        %s272 = scalar_lea.vmem %s1, %s271
        %s273 = smul.u32 2, %s21
      $region44: #{attention_gate_forward.1} parent=35 // pred_fallthru
        _
    $region36: #{attention_gate_forward.1} parent=5 // pred_fallthru
      _
    %p274 = scmp.le.s32.totalorder 1, %s13
    %p275 = scmp.lt.s32.totalorder %s13, 3
    %p276 = pnand %p274, %p275
    %p277 = pneg %p276
    // Predicated region
    $region45: #{attention_gate_forward.1} parent=5 // pred_check
      _
    $region46: #{attention_gate_forward.1} parent=5 // pred_check_branch
      %279 = sbr.rel (%p276) target = $region48
    $region47: #{attention_gate_forward.1} parent=5 // pred_region
      %s280 = ssub.s32 %s13, 1
      %s281 = smul.u32 2, %s23
      %p282 = scmp.lt.s32.totalorder %s22, 1
      %s283 = scalar_select %p282, %s22, 1
      %p284 = scmp.lt.s32.totalorder %s281, 1
      %s285 = scalar_select %p284, %s281, 1
      %s286 = smul.addr %s283, 2
      %s287 = sadd.s32 %s285, %s286
      %s288 = smul.addr %s287, 4
      %s289 = scalar_lea.vmem %s0, %s288
      %p290 = pneg %p53
      %p291 = pneg %p50
      %s292 = smul.u32 2, %s23
      %p293 = scmp.lt.s32.totalorder %s22, 1
      %s294 = scalar_select %p293, %s22, 1
      %p295 = scmp.lt.s32.totalorder %s292, 1
      %s296 = scalar_select %p295, %s292, 1
      %s297 = smul.addr %s294, 2
      %s298 = sadd.s32 %s296, %s297
      %s299 = smul.addr %s298, 8
      %s300 = scalar_lea.vmem %s1, %s299
      %p301 = pneg %p81
      %p302 = pneg %p78
      %p303 = pneg %p102
      %p304 = pneg %p99
      %p305 = pneg %p123
      %p306 = pneg %p120
      %p307 = pneg %p144
      %p308 = pneg %p141
      %p309 = pneg %p165
      %p310 = pneg %p162
      %p311 = pneg %p186
      %p312 = pneg %p183
      %p313 = pneg %p214
      %p314 = pneg %p211
      %s315 = smul.u32 2, %s23
      %p316 = scmp.lt.s32.totalorder %s22, 1
      %s317 = scalar_select %p316, %s22, 1
      %p318 = scmp.lt.s32.totalorder %s315, 1
      %s319 = scalar_select %p318, %s315, 1
      %s320 = smul.addr %s317, 2
      %s321 = sadd.s32 %s319, %s320
      %s322 = smul.addr %s321, 4
      %s323 = scalar_lea.vmem %s7, %s322
      %s324 = smul.u32 2, %s23
      %p325 = scmp.lt.s32.totalorder %s22, 1
      %s326 = scalar_select %p325, %s22, 1
      %p327 = scmp.lt.s32.totalorder %s324, 1
      %s328 = scalar_select %p327, %s324, 1
      %s329 = smul.addr %s326, 2
      %s330 = sadd.s32 %s328, %s329
      %s331 = smul.addr %s330, 4
      %s332 = scalar_lea.vmem %s0, %s331
      %s333 = smul.u32 2, %s23
      %s334 = smul.u32 2, %s23
      %p335 = scmp.lt.s32.totalorder %s22, 1
      %s336 = scalar_select %p335, %s22, 1
      %p337 = scmp.lt.s32.totalorder %s334, 1
      %s338 = scalar_select %p337, %s334, 1
      %s339 = smul.addr %s336, 2
      %s340 = sadd.s32 %s338, %s339
      %s341 = smul.addr %s340, 8
      %s342 = scalar_lea.vmem %s1, %s341
      %s343 = smul.u32 2, %s23
      %s344 = smul.u32 2, %s23
      %p345 = scmp.lt.s32.totalorder %s22, 1
      %s346 = scalar_select %p345, %s22, 1
      %p347 = scmp.lt.s32.totalorder %s344, 1
      %s348 = scalar_select %p347, %s344, 1
      %s349 = smul.addr %s346, 2
      %s350 = sadd.s32 %s348, %s349
      %s351 = smul.addr %s350, 4
      %s352 = scalar_lea.vmem %s7, %s351
      %s353 = smul.u32 2, %s23
      %v355 = vld [vmem:[%s2] sm:$0xf]
      %v356 = vld [vmem:[%s3] sm:$0xf]
      %v357 = vld [vmem:[%s5] sm:$0xf]
      %v358 = vld [vmem:[%s4] sm:$0xff]
      %v359 = vld [vmem:[%s6] sm:$0xff]
      %v360 = vld [vmem:[%s332] sm:$0xff]
      %v362 = vcombine.high %v360, %v360
      %v364 = vpack.c.bf16 %v360, %v360
      %v365 = vpack.c.bf16 %v362, %v362
      %v366 = vld [vmem:[%s342] sm:$0x3f]
      %v367 = vld [vmem:[%s342 + $0x8] sm:$0x3f]
      %v368 = vpack.c.bf16 %v366, %v366
      %v369 = vpack.c.bf16 %v367, %v367
      %vm370 = vcmask 48128
      %v372 = vsel %vm370, %v356, 0
      %vm374 = vcmask 1042432
      %v376 = vsel %vm374, %v368, 0
      %v379 = vsel %vm374, %v369, 0
      %381 = vmatprep.subr.bf16.mxu0 %v379
      %382 = vmatpush1.bf16.msra.mxu0 %v376
      %383 = vmatprep.subr.bf16.mxu0 0
      %384 = vmatpush1.bf16.msra.mxu0 0
      %385 = vmatprep.subr.bf16.mxu0 0
      %386 = vmatpush1.bf16.msra.mxu0 0
      %387 = vmatprep.subr.bf16.mxu0 0
      %388 = vmatpush1.bf16.msra.mxu0 0
      %389 = vmatprep.subr.bf16.mxu0 0
      %390 = vmatpush1.bf16.msra.mxu0 0
      %391 = vmatprep.subr.bf16.mxu0 0
      %392 = vmatpush1.bf16.msra.mxu0 0
      %393 = vmatprep.subr.bf16.mxu0 0
      %394 = vmatpush1.bf16.msra.mxu0 0
      %395 = vmatprep.subr.bf16.mxu0 0
      %396 = vmatpush1.bf16.msra.mxu0 0
      %397 = vmatprep.subr.bf16.mxu0 0
      %398 = vmatpush1.bf16.msra.mxu0 0
      %399 = vmatprep.subr.bf16.mxu0 0
      %400 = vmatpush1.bf16.msra.mxu0 0
      %401 = vmatprep.subr.bf16.mxu0 0
      %402 = vmatpush1.bf16.msra.mxu0 0
      %403 = vmatprep.subr.bf16.mxu0 0
      %404 = vmatpush1.bf16.msra.mxu0 0
      %405 = vmatprep.subr.bf16.mxu0 0
      %406 = vmatpush1.bf16.msra.mxu0 0
      %407 = vmatprep.subr.bf16.mxu0 0
      %408 = vmatpush1.bf16.msra.mxu0 0
      %409 = vmatprep.subr.bf16.mxu0 0
      %410 = vmatpush1.bf16.msra.mxu0 0
      %411 = vmatprep.subr.bf16.mxu0 0
      %412 = vmatpush1.bf16.msra.mxu0 0
      %413 = vmatprep.mubr.bf16.mxu0 0
      %414 = vmatmul.mubr.bf16.gmra.mrb[0].mxu0 %v372
      %v415 = vpop.f32.mrb[0].mxu0
      %v416 = vadd.f32 0.0, %v415
      %v417 = vpop.f32.mrb[0].mxu0
      %v418 = vadd.f32 0.0, %v417
      %v419 = vpop.f32.mrb[0].mxu0
      %v420 = vpop.f32.mrb[0].mxu0
      %421 = vdwg.mxu0
      %vm422 = vcmask 31744
      %v424 = vsel %vm422, %v355, 0
      %vm426 = vcmask 1041408
      %v428 = vsel %vm426, %v364, 0
      %v431 = vsel %vm426, %v365, 0
      %433 = vmatprep.subr.bf16.mxu0 %v431
      %434 = vmatpush1.bf16.msra.mxu0 %v428
      %435 = vmatprep.subr.bf16.mxu0 0
      %436 = vmatpush1.bf16.msra.mxu0 0
      %437 = vmatprep.subr.bf16.mxu0 0
      %438 = vmatpush1.bf16.msra.mxu0 0
      %439 = vmatprep.subr.bf16.mxu0 0
      %440 = vmatpush1.bf16.msra.mxu0 0
      %441 = vmatprep.subr.bf16.mxu0 0
      %442 = vmatpush1.bf16.msra.mxu0 0
      %443 = vmatprep.subr.bf16.mxu0 0
      %444 = vmatpush1.bf16.msra.mxu0 0
      %445 = vmatprep.subr.bf16.mxu0 0
      %446 = vmatpush1.bf16.msra.mxu0 0
      %447 = vmatprep.subr.bf16.mxu0 0
      %448 = vmatpush1.bf16.msra.mxu0 0
      %449 = vmatprep.subr.bf16.mxu0 0
      %450 = vmatpush1.bf16.msra.mxu0 0
      %451 = vmatprep.subr.bf16.mxu0 0
      %452 = vmatpush1.bf16.msra.mxu0 0
      %453 = vmatprep.subr.bf16.mxu0 0
      %454 = vmatpush1.bf16.msra.mxu0 0
      %455 = vmatprep.subr.bf16.mxu0 0
      %456 = vmatpush1.bf16.msra.mxu0 0
      %457 = vmatprep.subr.bf16.mxu0 0
      %458 = vmatpush1.bf16.msra.mxu0 0
      %459 = vmatprep.subr.bf16.mxu0 0
      %460 = vmatpush1.bf16.msra.mxu0 0
      %461 = vmatprep.subr.bf16.mxu0 0
      %462 = vmatpush1.bf16.msra.mxu0 0
      %463 = vmatprep.subr.bf16.mxu0 0
      %464 = vmatpush1.bf16.msra.mxu0 0
      %465 = vmatprep.mubr.bf16.mxu0 0
      %466 = vmatmul.mubr.bf16.gmra.mrb[0].mxu0 %v424
      %v467 = vpop.f32.mrb[0].mxu0
      %v468 = vadd.f32 %v416, %v467
      %v469 = vpop.f32.mrb[0].mxu0
      %v470 = vadd.f32 %v418, %v469
      %v471 = vpop.f32.mrb[0].mxu0
      %v472 = vpop.f32.mrb[0].mxu0
      %473 = vdwg.mxu0
      %475 = vset.pattern.permute.xlu0 0
      %476 = vperm.xlu0 %475, %v358
      %v477 = vpop.permute.xlu0 %476
      %v479 = vadd.f32 %v468, %v477
      %v480 = vadd.f32 %v470, %v477
      %v481 = vmax.f32 %v479, 0.0
      %v482 = vmax.f32 %v480, 0.0
      %v483 = vpack.c.bf16 %v481, %v481
      %v484 = vpack.c.bf16 %v482, %v482
      %486 = vset.pattern.permute.xlu0 0
      %487 = vperm.xlu0 %486, %v359
      %v488 = vpop.permute.xlu0 %487
      %vm490 = vcmask 64512
      %v492 = vsel %vm490, %v357, 0
      %vm494 = vcmask 1043456
      %v496 = vsel %vm494, %v483, 0
      %v499 = vsel %vm494, %v484, 0
      %501 = vmatprep.subr.bf16.mxu0 %v499
      %502 = vmatpush1.bf16.msra.mxu0 %v496
      %503 = vmatprep.subr.bf16.mxu0 0
      %504 = vmatpush1.bf16.msra.mxu0 0
      %505 = vmatprep.subr.bf16.mxu0 0
      %506 = vmatpush1.bf16.msra.mxu0 0
      %507 = vmatprep.subr.bf16.mxu0 0
      %508 = vmatpush1.bf16.msra.mxu0 0
      %509 = vmatprep.subr.bf16.mxu0 0
      %510 = vmatpush1.bf16.msra.mxu0 0
      %511 = vmatprep.subr.bf16.mxu0 0
      %512 = vmatpush1.bf16.msra.mxu0 0
      %513 = vmatprep.subr.bf16.mxu0 0
      %514 = vmatpush1.bf16.msra.mxu0 0
      %515 = vmatprep.subr.bf16.mxu0 0
      %516 = vmatpush1.bf16.msra.mxu0 0
      %517 = vmatprep.subr.bf16.mxu0 0
      %518 = vmatpush1.bf16.msra.mxu0 0
      %519 = vmatprep.subr.bf16.mxu0 0
      %520 = vmatpush1.bf16.msra.mxu0 0
      %521 = vmatprep.subr.bf16.mxu0 0
      %522 = vmatpush1.bf16.msra.mxu0 0
      %523 = vmatprep.subr.bf16.mxu0 0
      %524 = vmatpush1.bf16.msra.mxu0 0
      %525 = vmatprep.subr.bf16.mxu0 0
      %526 = vmatpush1.bf16.msra.mxu0 0
      %527 = vmatprep.subr.bf16.mxu0 0
      %528 = vmatpush1.bf16.msra.mxu0 0
      %529 = vmatprep.subr.bf16.mxu0 0
      %530 = vmatpush1.bf16.msra.mxu0 0
      %531 = vmatprep.subr.bf16.mxu0 0
      %532 = vmatpush1.bf16.msra.mxu0 0
      %533 = vmatprep.mubr.bf16.mxu0 0
      %534 = vmatmul.mubr.bf16.gmra.mrb[0].mxu0 %v492
      %v535 = vpop.f32.mrb[0].mxu0
      %v536 = vadd.f32 %v488, %v535
      %v537 = vpop.f32.mrb[0].mxu0
      %v538 = vadd.f32 %v488, %v537
      %v539 = vpop.f32.mrb[0].mxu0
      %v540 = vpop.f32.mrb[0].mxu0
      %541 = vdwg.mxu0
      %v542 = vsub.f32 0.0, %v536
      %v543 = vsub.f32 0.0, %v538
      %v544 = vmul.f32 %v542, 1.442695
      %v545 = vpow.pop %v544
      %v546 = vmul.f32 %v543, 1.442695
      %v547 = vpow.pop %v546
      %v548 = vadd.f32 %v545, 1.0
      %v549 = vadd.f32 %v547, 1.0
      %v550 = vrcp.pop %v548
      %v551 = vrcp.pop %v549
      %v552 = vpack.c.bf16 %v550, %v550
      %v553 = vpack.c.bf16 %v551, %v551
      %v556 = vunpack.c.l.b16 %v552
      %v557 = vunpack.c.l.b16 %v553
      %v558 = vpack.c.b16 %v557, %v556
      %560 = vst [vmem:[%s352] sm:$0xff] %v558
      %s561 = smul.u32 2, %s23
      %p562 = scmp.lt.s32.totalorder %s22, 1
      %s563 = scalar_select %p562, %s22, 1
      %p564 = scmp.lt.s32.totalorder %s561, 1
      %s565 = scalar_select %p564, %s561, 1
      %s566 = smul.addr %s563, 2
      %s567 = sadd.s32 %s565, %s566
      %s568 = smul.addr %s567, 4
      %s569 = scalar_lea.vmem %s7, %s568
      // Predicated region
      $region49: #{attention_gate_forward.1} parent=47 // pred_check
        %p570 = pneg %p211
      $region50: #{attention_gate_forward.1} parent=47 // pred_check_branch
        %572 = sbr.rel (%p570) target = $region52
      $region51: #{attention_gate_forward.1} parent=47 // pred_region
        %s573 = smul.u32 2, %s23
      $region52: #{attention_gate_forward.1} parent=47 // pred_fallthru
        _
    $region48: #{attention_gate_forward.1} parent=5 // pred_fallthru
      _
    %p574 = scmp.le.s32.totalorder 2, %s13
    // Predicated region
    $region53: #{attention_gate_forward.1} parent=5 // pred_check
      %p575 = pneg %p574
    $region54: #{attention_gate_forward.1} parent=5 // pred_check_branch
      %577 = sbr.rel (%p575) target = $region56
    $region55: #{attention_gate_forward.1} parent=5 // pred_region
      %s578 = ssub.s32 %s13, 2
      // Predicated region
      $region57: #{attention_gate_forward.1} parent=55 // pred_check
        %p579 = pneg %p217
      $region58: #{attention_gate_forward.1} parent=55 // pred_check_branch
        %581 = sbr.rel (%p579) target = $region60
      $region59: #{attention_gate_forward.1} parent=55 // pred_region
        %s582 = smul.u32 2, %s25
        %p583 = scmp.lt.s32.totalorder %s24, 1
        %s584 = scalar_select %p583, %s24, 1
        %p585 = scmp.lt.s32.totalorder %s582, 1
        %s586 = scalar_select %p585, %s582, 1
        %s587 = smul.addr %s584, 2
        %s588 = sadd.s32 %s586, %s587
        %s589 = smul.addr %s588, 4
        %s590 = scalar_lea.vmem %s7, %s589
      $region60: #{attention_gate_forward.1} parent=55 // pred_fallthru
        _
    $region56: #{attention_gate_forward.1} parent=5 // pred_fallthru
      _
  $region6: #{attention_gate_forward.1} parent=0 // loop_footer
    %s17 = sadd.s32 1, %s13
  $region7: #{attention_gate_forward.1} parent=0 // loop_footer_branch
    %12 = sbr.rel target = $region3
  $region8: #{attention_gate_forward.1} parent=0 // loop_exit
    _

</llo_original>
